<compile_context>
chip_gen: v6e
topology: v6e:2x2x1
jax: 0.10.0
libtpu: 0.0.40
codegen_flags: <defaults>
</compile_context>

<pallas_src>
import functools

import jax
import jax.numpy as jnp
import numpy as np
from jax.experimental import pallas as pl
from jax.experimental.pallas import tpu as pltpu

# Habana Gaudi2 fp8-143 dynamic-range max, as used by neural_compressor (E4M3_AMAX = 240).
# All scaled values are <= 240, a range where OCP e4m3fn and Gaudi fp8-143 grids agree.
FP8_E4M3_AMAX = 240.0


def _round_up(x, n):
    return (x + n - 1) // n * n


def _pick_tile(dim, target):
    """Largest multiple of 128 that divides `dim` and is <= target; else the full dim.

    GEMM callers pass dims that were already padded to a multiple of 128, so the
    full-dim fallback is only reachable for the (VMEM-cheap) quantize pass.
    """
    if dim <= target:
        return dim
    t = (target // 128) * 128
    while t >= 128:
        if dim % t == 0:
            return t
        t -= 128
    return dim


def _vmem_limit_bytes():
    """Generation-aware scoped-VMEM limit (half of physical per-core VMEM, capped)."""
    try:
        cap = int(pltpu.get_tpu_info().vmem_capacity_bytes)
    except Exception:  # be robust if the query is unavailable
        cap = 64 * 1024 * 1024
    return min(cap // 2, 64 * 1024 * 1024)


def _quantize_kernel(scale_ref, x_ref, xq_ref, *, tm, m_valid, needs_mask):
    """Quantize one activation tile to e4m3: x * (1/input_scale) then RNE cast.

    Rows >= m_valid (the padded tail of the last M tile) are written as exact fp8
    zeros so the GEMM's padded output rows are deterministic (and discarded anyway).
    """
    inv = scale_ref[0]
    x = x_ref[...].astype(jnp.float32) * inv
    if needs_mask:
        rows = pl.program_id(0) * tm + jax.lax.broadcasted_iota(jnp.int32, x.shape, 0)
        x = jnp.where(rows < m_valid, x, 0.0)
    xq_ref[...] = x.astype(jnp.float8_e4m3fn)


def _fp8_gemm_kernel(scale_ref, xq_ref, w_ref, b_ref, o_ref, acc_ref):
    """fp8 x fp8 GEMM tile: direct e4m3->bf16 upcast, MXU matmul, f32 accumulate,
    dequant (input_scale * weight_scale) + bias on the last K step."""
    @pl.when(pl.program_id(2) == 0)
    def _init():
        acc_ref[...] = jnp.zeros_like(acc_ref)

    # e4m3 -> bf16 is exact, so the bf16 MXU path reproduces the fp8 GEMM bit-wise
    # up to f32 accumulation order.  No f32 intermediate (review: halves VALU work).
    # TODO(synk): on v7x the MXU consumes e4m3 natively; feed fp8 operands directly.
    acc_ref[...] += jnp.dot(xq_ref[...].astype(jnp.bfloat16),
                            w_ref[...].astype(jnp.bfloat16),
                            preferred_element_type=jnp.float32)

    @pl.when(pl.program_id(2) == pl.num_programs(2) - 1)
    def _finalize():
        dequant = scale_ref[0]  # input_scale * weight_scale (hoisted to wrapper)
        o_ref[...] = (acc_ref[...] * dequant
                      + b_ref[...].astype(jnp.float32)).astype(o_ref.dtype)


def fp8_dynamic_linear(x, weight_fp8, weight_scale, bias=None,
                       out_dtype=jnp.float32, tm=512, tn=512, tk=1024):
    """JAX/Pallas equivalent of FP8DynamicLinear.forward."""
    in_features, out_features = weight_fp8.shape
    assert x.shape[-1] == in_features, "GEMM not possible"

    vmem_limit = _vmem_limit_bytes()

    x2d = x.reshape(-1, in_features)
    m = x2d.shape[0]

    # ---- dynamic activation scale (plain XLA reduce: HBM-bound, already at roofline)
    amax = jnp.max(jnp.abs(x2d.astype(jnp.float32)))
    # NOTE: clamp diverges from the PyTorch reference for all-zero input (which would
    # produce an inf scale / NaN output there); intentional to keep the kernel finite.
    amax = jnp.maximum(amax, 1e-12)
    input_scale = amax / FP8_E4M3_AMAX              # calculate_qparams(min, max, e4m3)
    input_scale_inv = (1.0 / input_scale).reshape(1).astype(jnp.float32)
    dequant_scale = (input_scale
                     * jnp.asarray(weight_scale, jnp.float32).reshape(())
                     ).reshape(1).astype(jnp.float32)

    # ---- tile selection: 128-aligned everywhere; ragged K/N handled by cheap fp8 pads
    tm = max(128, (tm // 128) * 128)
    tm = min(tm, _round_up(m, 128))
    m_pad = _round_up(m, tm)
    grid_m = m_pad // tm

    k_pad = _round_up(in_features, 128)
    n_pad = _round_up(out_features, 128)
    tk = _pick_tile(k_pad, max(128, tk))
    tn = _pick_tile(n_pad, max(128, tn))
    grid_k = k_pad // tk
    grid_n = n_pad // tn

    # ---- pass 1: quantize activations to e4m3 once (padded rows -> exact fp8 zeros)
    tk_q = _pick_tile(in_features, 2048)   # bound VMEM for very wide activations
    quant_kernel = functools.partial(_quantize_kernel, tm=tm, m_valid=m,
                                     needs_mask=(m_pad != m))
    x_q = pl.pallas_call(
        quant_kernel,
        out_shape=jax.ShapeDtypeStruct((m_pad, in_features), jnp.float8_e4m3fn),
        grid=(grid_m, in_features // tk_q),
        in_specs=[
            pl.BlockSpec(memory_space=pltpu.MemorySpace.SMEM),   # (1,) 1/input_scale
            pl.BlockSpec((tm, tk_q), lambda i, k: (i, k)),       # f32/bf16 activations
        ],
        out_specs=pl.BlockSpec((tm, tk_q), lambda i, k: (i, k)),
        compiler_params=pltpu.CompilerParams(
            dimension_semantics=("parallel", "parallel"),
            vmem_limit_bytes=vmem_limit),
    )(input_scale_inv, x2d)

    if k_pad != in_features:
        # TODO(synk): fold this (rare, fp8-cheap) K pad into the quantize pass.
        x_q = jnp.pad(x_q, ((0, 0), (0, k_pad - in_features)))

    w_use = weight_fp8
    if (k_pad, n_pad) != (in_features, out_features):
        w_use = jnp.pad(weight_fp8,
                        ((0, k_pad - in_features), (0, n_pad - out_features)))

    if bias is None:
        bias2d = jnp.zeros((1, n_pad), out_dtype)
    else:
        bias2d = bias.reshape(1, out_features).astype(out_dtype)
        if n_pad != out_features:
            bias2d = jnp.pad(bias2d, ((0, 0), (0, n_pad - out_features)))

    # ---- pass 2: fp8 GEMM tiled over (M, N, K) with an f32 VMEM accumulator
    out2d = pl.pallas_call(
        _fp8_gemm_kernel,
        out_shape=jax.ShapeDtypeStruct((m_pad, n_pad), out_dtype),
        grid=(grid_m, grid_n, grid_k),
        in_specs=[
            pl.BlockSpec(memory_space=pltpu.MemorySpace.SMEM),   # (1,) dequant scale
            pl.BlockSpec((tm, tk), lambda i, j, k: (i, k)),      # fp8 activation tile
            pl.BlockSpec((tk, tn), lambda i, j, k: (k, j)),      # fp8 weight tile
            pl.BlockSpec((1, tn), lambda i, j, k: (0, j)),       # bias tile
        ],
        out_specs=pl.BlockSpec((tm, tn), lambda i, j, k: (i, j)),
        scratch_shapes=[pltpu.VMEM((tm, tn), jnp.float32)],
        compiler_params=pltpu.CompilerParams(
            dimension_semantics=("parallel", "parallel", "arbitrary"),
            vmem_limit_bytes=vmem_limit),
    )(dequant_scale, x_q, w_use, bias2d)

    out2d = out2d[:m, :out_features]
    return out2d.reshape(*x.shape[:-1], out_features)


def make_fp8_dynamic_linear_params(key, in_features, out_features, out_dtype=jnp.float32):
    """Deterministic synthetic params; mirrors FP8DynamicLinear.from_float."""
    kw, kb = jax.random.split(key)
    w = jax.random.normal(kw, (out_features, in_features), jnp.float32) * 0.05
    b = jax.random.normal(kb, (out_features,), jnp.float32) * 0.1
    # MinMax observer on the weight -> per-tensor scale.
    weight_scale = jnp.max(jnp.abs(w)) / FP8_E4M3_AMAX
    weight_scale_inv = 1.0 / weight_scale
    # weight buffer = cast_to_fp8_v2(W.T * weight_scale_inv): shape (in, out), fp8.
    weight_fp8 = (w.T * weight_scale_inv).astype(jnp.float8_e4m3fn)
    bias = b.astype(out_dtype)
    return weight_fp8, weight_scale, bias


def reference_fp8_dynamic_linear(x, weight_fp8, weight_scale, bias, out_dtype=jnp.float32):
    """Pure-JAX reference of the same math."""
    in_features = weight_fp8.shape[0]
    x2d = x.reshape(-1, in_features).astype(jnp.float32)
    amax = jnp.maximum(jnp.abs(x2d.min()), jnp.abs(x2d.max()))
    input_scale = amax / FP8_E4M3_AMAX
    input_scale_inv = 1.0 / input_scale
    x_q = (x2d * input_scale_inv).astype(jnp.float8_e4m3fn).astype(jnp.float32)
    w_q = weight_fp8.astype(jnp.float32)
    out = (x_q @ w_q) * (input_scale * weight_scale) + bias.astype(jnp.float32)
    out = out.astype(out_dtype)
    return out.reshape(*x.shape[:-1], weight_fp8.shape[1])


if __name__ == "__main__":
    key = jax.random.PRNGKey(0)
    kx, kp = jax.random.split(key)

    # Small shapes chosen so the kernels still exercise the ragged-M mask
    # (144 rows vs. 128/256-row tiles), a multi-tile grid in M/N, and K-axis
    # accumulation (2 k-steps) in the explicit-tile run.
    batch, seq, in_features, out_features = 2, 72, 256, 256
    x = jax.random.normal(kx, (batch, seq, in_features), jnp.float32)
    weight_fp8, weight_scale, bias = make_fp8_dynamic_linear_params(
        kp, in_features, out_features)

    ref = reference_fp8_dynamic_linear(x, weight_fp8, weight_scale, bias)

    # Explicit small tiles: grid (2, 2, 2), K accumulation, masked last M tile.
    out = fp8_dynamic_linear(x, weight_fp8, weight_scale, bias,
                             tm=128, tn=128, tk=128)
    out = jax.block_until_ready(out)
    assert out.shape == (batch, seq, out_features)
    np.testing.assert_allclose(np.asarray(out), np.asarray(ref), rtol=1e-3, atol=1e-3)

    # Default tiles (clamped to the problem size): single-block grid.
    out2 = fp8_dynamic_linear(x, weight_fp8, weight_scale, bias)
    out2 = jax.block_until_ready(out2)
    np.testing.assert_allclose(np.asarray(out2), np.asarray(ref), rtol=1e-3, atol=1e-3)

    print("KERNEL_OK")
</pallas_src>

<mosaic_0001>
module attributes {stable_mosaic.version = 11 : i64} {
  func.func @_quantize_kernel(%arg0: i32, %arg1: i32, %arg2: memref<1xf32, #tpu.memory_space<smem>>, %arg3: memref<128x256xf32, #tpu.memory_space<vmem>>, %arg4: memref<128x256xf8E4M3FN, #tpu.memory_space<vmem>>) attributes {dimension_semantics = [#tpu.dimension_semantics<parallel>, #tpu.dimension_semantics<parallel>], iteration_bounds = array<i64: 2, 1>, scalar_prefetch = 0 : i64, scratch_operands = 0 : i64, tpu.core_type = #tpu.core_type<tc>, window_params = [{transform_indices = @transform_0, window_bounds = array<i64: 1>}, {transform_indices = @transform_1, window_bounds = array<i64: 128, 256>}, {transform_indices = @transform_2, window_bounds = array<i64: 128, 256>}]} {
    %c0 = arith.constant 0 : index
    %0 = memref.load %arg2[%c0] : memref<1xf32, #tpu.memory_space<smem>>
    %c0_0 = arith.constant 0 : index
    %c0_1 = arith.constant 0 : index
    %1 = vector.load %arg3[%c0_0, %c0_1] : memref<128x256xf32, #tpu.memory_space<vmem>>, vector<128x256xf32>
    %2 = vector.broadcast %0 : f32 to vector<128x256xf32>
    %3 = arith.mulf %1, %2 : vector<128x256xf32>
    %c128_i32 = arith.constant 128 : i32
    %4 = arith.muli %arg0, %c128_i32 : i32
    %5 = tpu.iota {dimensions = array<i32: 0>} : vector<128x256xi32>
    %6 = vector.broadcast %4 : i32 to vector<128x256xi32>
    %7 = arith.addi %6, %5 : vector<128x256xi32>
    %c144_i32 = arith.constant 144 : i32
    %8 = vector.broadcast %c144_i32 : i32 to vector<128x256xi32>
    %9 = arith.cmpi slt, %7, %8 : vector<128x256xi32>
    %cst = arith.constant 0.000000e+00 : f32
    %10 = vector.broadcast %cst : f32 to vector<128x256xf32>
    %11 = arith.select %9, %3, %10 : vector<128x256xi1>, vector<128x256xf32>
    %12 = arith.truncf %11 : vector<128x256xf32> to vector<128x256xf8E4M3FN>
    %c0_2 = arith.constant 0 : index
    %c0_3 = arith.constant 0 : index
    %13 = vector.load %arg4[%c0_2, %c0_3] : memref<128x256xf8E4M3FN, #tpu.memory_space<vmem>>, vector<128x256xf8E4M3FN>
    tpu.vector_store %arg4[%c0_2, %c0_3], %12 {strides = array<i32>} : memref<128x256xf8E4M3FN, #tpu.memory_space<vmem>>, vector<128x256xf8E4M3FN>,
    return
  }
  func.func @transform_0(%arg0: i32, %arg1: i32) -> i32 {
    %c0_i32 = arith.constant 0 : i32
    %c0_i32_0 = arith.constant 0 : i32
    return %c0_i32 : i32
  }
  func.func @transform_1(%arg0: i32, %arg1: i32) -> (i32, i32) {
    %c0_i32 = arith.constant 0 : i32
    return %arg0, %arg1 : i32, i32
  }
  func.func @transform_2(%arg0: i32, %arg1: i32) -> (i32, i32) {
    %c0_i32 = arith.constant 0 : i32
    return %arg0, %arg1 : i32, i32
  }
}

</mosaic_0001>

<llo_original>
// kernel: tpu_custom_call.1
$region0: #{tpu_custom_call.1}
  #allocation0 [shape = 'u32[]', space=smem, size = 0x4, offset = 0x4, fixed_abs, tag = 'smem constant byte address 0x4 - core index']
  #allocation1 [shape = 'u32[144,128]{1,0:T(1,128)}', space=vmem, size = 0x12000, scoped, tag = 'internal scratch']
  #allocation2 [shape = 'f32[1]{0:T(128)S(6)}', space=smem, size = 0x200, scoped, tag = 'scoped memory for tpu_custom_call.1']
  %s0 = inlined_call_operand.<no memory space> [shape: f32[1], index: 0, kind: input, shape index: {}]
  %s1 = inlined_call_operand.hbm [shape: f32[144,256], index: 1, kind: input, shape index: {}]
  %s2 = inlined_call_operand.hbm [shape: f8e4m3fn[256,256], index: 2, kind: output, shape index: {}]
  %s3 = sld [smem:[#allocation0]]
  $region45: #{tpu_custom_call.1} parent=0
    _
  %s5 = ssub.s32 1, %s3
  %s6 = scalar_select 0, %s5, %s3
  %7 = sst [smem:[#allocation2]] %s0
  $region1: #{tpu_custom_call.1} parent=0
    #allocation3 [shape = 'u8[262144]{0}', space=vmem, size = 0x40000, scoped, tag = 'input window, operand 1']
    #allocation4 [shape = 's32[2]{0}', space=sflag, size = 0x8, scoped, tag = 'scoped memory for tpu_custom_call.1']
    #allocation5 [shape = 's32[2]{0}', space=sflag, size = 0x8, scoped, tag = 'scoped memory for tpu_custom_call.1']
    #allocation6 [shape = 'u8[65536]{0}', space=vmem, size = 0x10000, scoped, tag = 'output window, operand 0']
    %8 = vsyncpa [#allocation4], 0
    %s9 = scalar_lea.sflag [#allocation4], 1
    %10 = vsyncpa %s9, 0
    %11 = vsyncpa [#allocation5], 0
    %s12 = scalar_lea.sflag [#allocation5], 1
    %13 = vsyncpa %s12, 0
    loop: start=0, step=1, limit=4
    $region2: #{tpu_custom_call.1} parent=1 // loop_pre_header
      _
    $region3: #{tpu_custom_call.1} parent=1 // loop_header
      %s15 = sphi 0, %s19
      %p16 = scmp.ge.s32.totalorder %s15, 4
      %s22 = sphi 0, %s34
      %s23 = sphi 0, %s30
      %s24 = sphi 0, %s22
      %s25 = sphi 0, %s23
      %s26 = sphi 0, %s24
      %s27 = sphi 0, %s25
      %s35 = sphi 0, %s35
      %s37 = sphi 0, %s35
      %s38 = sphi 0, %s37
      %s52 = sphi 0, %s38
      %s60 = sphi 0, %s62
      %s63 = sphi 0, %s60
      %s64 = sphi 0, %s63
      %s80 = sphi 0, %s64
      %s88 = sphi 0, %s90
      %s91 = sphi 0, %s88
      %s92 = sphi 0, %s91
      %s108 = sphi 0, %s92
    $region4: #{tpu_custom_call.1} parent=1 // loop_header_branch
      %18 = sbr.rel (%p16) target = $region8
    $region5: #{tpu_custom_call.1} parent=1 // loop_body
      %s20 = ssub.s32 %s15, 1
      %s21 = ssub.s32 %s15, 2
      %s28 = sadd.s32 1, %s23
      %p29 = scmp.ge.s32.totalorder %s28, 1
      %s30 = scalar_select %p29, 0, %s28
      %s31 = sadd.s32 1, %s22
      %s32 = scalar_select %p29, %s31, %s22
      %p33 = scmp.ge.s32.totalorder %s32, 2
      %s34 = scalar_select %p33, 0, %s32
      %s36 = sadd.s32 %s35, 1
      %p39 = scmp.eq.s32.totalorder %s15, 1
      %p40 = scmp.ne.s32.totalorder %s35, %s37
      %p41 = scmp.eq.s32.totalorder %s15, 0
      %p42 = por %p40, %p41
      %p43 = scmp.ne.s32.totalorder %s35, %s37
      %p44 = scmp.eq.s32.totalorder %s20, 1
      %p45 = por %p43, %p44
      %p46 = scmp.ne.s32.totalorder %s37, %s38
      %p47 = scmp.eq.s32.totalorder %s20, 0
      %p48 = por %p46, %p47
      %p49 = scmp.ne.s32.totalorder %s37, %s38
      %p50 = scmp.eq.s32.totalorder %s21, 1
      %p51 = por %p49, %p50
      %p53 = scmp.ne.s32.totalorder %s38, %s52
      %p54 = scmp.eq.s32.totalorder %s21, 0
      %p55 = por %p53, %p54
      %s56 = ssub.s32 %s22, %s34
      %s57 = ssub.s32 %s23, %s30
      %s58 = sor.u32 %s56, %s57
      %p59 = scmp.eq.s32.totalorder %s58, 0
      %s61 = sadd.s32 %s60, 1
      %s62 = scalar_select %p59, %s60, %s61
      %p65 = pneg %p59
      %p66 = scmp.eq.s32.totalorder %s15, 1
      %p67 = por %p65, %p66
      %p68 = scmp.ne.s32.totalorder %s60, %s63
      %p69 = scmp.eq.s32.totalorder %s15, 0
      %p70 = por %p68, %p69
      %p71 = scmp.ne.s32.totalorder %s60, %s63
      %p72 = scmp.eq.s32.totalorder %s20, 1
      %p73 = por %p71, %p72
      %p74 = scmp.ne.s32.totalorder %s63, %s64
      %p75 = scmp.eq.s32.totalorder %s20, 0
      %p76 = por %p74, %p75
      %p77 = scmp.ne.s32.totalorder %s63, %s64
      %p78 = scmp.eq.s32.totalorder %s21, 1
      %p79 = por %p77, %p78
      %p81 = scmp.ne.s32.totalorder %s64, %s80
      %p82 = scmp.eq.s32.totalorder %s21, 0
      %p83 = por %p81, %p82
      %s84 = ssub.s32 %s22, %s34
      %s85 = ssub.s32 %s23, %s30
      %s86 = sor.u32 %s84, %s85
      %p87 = scmp.eq.s32.totalorder %s86, 0
      %s89 = sadd.s32 %s88, 1
      %s90 = scalar_select %p87, %s88, %s89
      %p93 = pneg %p87
      %p94 = scmp.eq.s32.totalorder %s15, 1
      %p95 = por %p93, %p94
      %p96 = scmp.ne.s32.totalorder %s88, %s91
      %p97 = scmp.eq.s32.totalorder %s15, 0
      %p98 = por %p96, %p97
      %p99 = scmp.ne.s32.totalorder %s88, %s91
      %p100 = scmp.eq.s32.totalorder %s20, 1
      %p101 = por %p99, %p100
      %p102 = scmp.ne.s32.totalorder %s91, %s92
      %p103 = scmp.eq.s32.totalorder %s20, 0
      %p104 = por %p102, %p103
      %p105 = scmp.ne.s32.totalorder %s91, %s92
      %p106 = scmp.eq.s32.totalorder %s21, 1
      %p107 = por %p105, %p106
      %p109 = scmp.ne.s32.totalorder %s92, %s108
      %p110 = scmp.eq.s32.totalorder %s21, 0
      %p111 = por %p109, %p110
      %p112 = scmp.le.s32.totalorder 1, %s15
      %p113 = scmp.lt.s32.totalorder %s15, 3
      %p114 = pnand %p112, %p113
      %p115 = pneg %p114
      // Predicated region
      $region9: #{tpu_custom_call.1} parent=5 // pred_check
        _
      $region10: #{tpu_custom_call.1} parent=5 // pred_check_branch
        %117 = sbr.rel (%p114) target = $region12
      $region11: #{tpu_custom_call.1} parent=5 // pred_region
        %s118 = ssub.s32 %s15, 1
        // Predicated region
        $region13: #{tpu_custom_call.1} parent=11 // pred_check
          %p119 = pneg %p48
        $region14: #{tpu_custom_call.1} parent=11 // pred_check_branch
          %121 = sbr.rel (%p119) target = $region16
        $region15: #{tpu_custom_call.1} parent=11 // pred_region
          _
        $region16: #{tpu_custom_call.1} parent=11 // pred_fallthru
          _
      $region12: #{tpu_custom_call.1} parent=5 // pred_fallthru
        _
      %p122 = scmp.lt.s32.totalorder %s15, 2
      // Predicated region
      $region17: #{tpu_custom_call.1} parent=5 // pred_check
        %p123 = pneg %p122
      $region18: #{tpu_custom_call.1} parent=5 // pred_check_branch
        %125 = sbr.rel (%p123) target = $region20
      $region19: #{tpu_custom_call.1} parent=5 // pred_region
        // Predicated region
        $region21: #{tpu_custom_call.1} parent=19 // pred_check
          %p126 = pneg %p70
        $region22: #{tpu_custom_call.1} parent=19 // pred_check_branch
          %128 = sbr.rel (%p126) target = $region24
        $region23: #{tpu_custom_call.1} parent=19 // pred_region
          %s129 = sand.u32 %s60, 1
          %s130 = scalar_lea.sflag [#allocation4], %s129
          %s131 = sand.u32 %s60, 1
          %s132 = smul.addr %s131, 256
          %s133 = scalar_lea.vmem [#allocation3], %s132
          %s134 = smul.u32 16, %s22
          %s135 = smul.u32 2, %s23
          %s136 = ssub.s32 18, %s134
          %p137 = scmp.lt.s32.totalorder %s136, 16
          %s138 = scalar_select %p137, %s136, 16
          %s139 = smul.u32 128, %s138
          %s140 = smul.u32 %s139, 2
          %s142 = ssub.s32 4096, %s140
          %143 = vsyncadd %s130, %s142
          %p144 = scmp.ne.s32.totalorder 0, %s140
          %s145 = smul.addr %s134, 2
          %s146 = sadd.s32 %s135, %s145
          %s147 = smul.addr %s146, 128
          %s148 = scalar_lea.hbm %s1, %s147
          %s149 = smul.u32 16, %s138
          %s150 = sshll.u32 %s133, 4
          %s151 = int_to_ptr.vmem [resolvable:$true] %s150
          %s152 = sshll.u32 %s149, 4
          %156 = dma.hbm_to_vmem [thread:$0]  (%p144), %s148, %s152, %s151, %s130, 256, 256, 16
        $region24: #{tpu_custom_call.1} parent=19 // pred_fallthru
          _
      $region20: #{tpu_custom_call.1} parent=5 // pred_fallthru
        _
      %p157 = scmp.le.s32.totalorder 1, %s15
      %p158 = scmp.lt.s32.totalorder %s15, 3
      %p159 = pnand %p157, %p158
      %p160 = pneg %p159
      // Predicated region
      $region25: #{tpu_custom_call.1} parent=5 // pred_check
        _
      $region26: #{tpu_custom_call.1} parent=5 // pred_check_branch
        %162 = sbr.rel (%p159) target = $region28
      $region27: #{tpu_custom_call.1} parent=5 // pred_region
        %s163 = ssub.s32 %s15, 1
        %s164 = sand.u32 %s63, 1
        %s165 = scalar_lea.sflag [#allocation4], %s164
        %s166 = sand.u32 %s63, 1
        %s167 = smul.addr %s166, 256
        %s168 = scalar_lea.vmem [#allocation3], %s167
        // Predicated region
        $region29: #{tpu_custom_call.1} parent=27 // pred_check
          %p169 = pneg %p76
        $region30: #{tpu_custom_call.1} parent=27 // pred_check_branch
          %171 = sbr.rel (%p169) target = $region32
        $region31: #{tpu_custom_call.1} parent=27 // pred_region
          %172 = dma.done %s165, 4096
        $region32: #{tpu_custom_call.1} parent=27 // pred_fallthru
          _
        %p173 = pneg %p48
        %p174 = pneg %p45
        %s175 = sand.u32 %s63, 1
        %s176 = scalar_lea.sflag [#allocation4], %s175
        %s177 = sand.u32 %s63, 1
        %s178 = smul.addr %s177, 256
        %s179 = scalar_lea.vmem [#allocation3], %s178
        %p180 = pneg %p76
        %p181 = pneg %p73
        %p182 = pneg %p104
        %p183 = pneg %p101
        %s184 = sand.u32 %s91, 1
        %s185 = scalar_lea.sflag [#allocation5], %s184
        %s186 = sand.u32 %s91, 1
        %s187 = smul.addr %s186, 64
        %s188 = scalar_lea.vmem [#allocation6], %s187
        %s189 = smul.u32 16, %s24
        %s190 = smul.u32 2, %s25
        %s191 = ssub.s32 18, %s189
        %p192 = scmp.lt.s32.totalorder %s191, 16
        %s193 = scalar_select %p192, %s191, 16
        %s194 = smul.u32 128, %s193
        %s195 = smul.u32 %s194, 2
        %s196 = smul.u32 4, %s24
        %s197 = smul.u32 2, %s25
        %s198 = sld [smem:[#allocation2]]
        %v199 = vld [vmem:[%s168] sm:$0xff]
        %v200 = vld [vmem:[%s168 + $0x8] sm:$0xff]
        %v201 = vld [vmem:[%s168 + $0x10] sm:$0xff]
        %v202 = vld [vmem:[%s168 + $0x18] sm:$0xff]
        %v203 = vld [vmem:[%s168 + $0x20] sm:$0xff]
        %v204 = vld [vmem:[%s168 + $0x28] sm:$0xff]
        %v205 = vld [vmem:[%s168 + $0x30] sm:$0xff]
        %v206 = vld [vmem:[%s168 + $0x38] sm:$0xff]
        %v207 = vld [vmem:[%s168 + $0x40] sm:$0xff]
        %v208 = vld [vmem:[%s168 + $0x48] sm:$0xff]
        %v209 = vld [vmem:[%s168 + $0x50] sm:$0xff]
        %v210 = vld [vmem:[%s168 + $0x58] sm:$0xff]
        %v211 = vld [vmem:[%s168 + $0x60] sm:$0xff]
        %v212 = vld [vmem:[%s168 + $0x68] sm:$0xff]
        %v213 = vld [vmem:[%s168 + $0x70] sm:$0xff]
        %v214 = vld [vmem:[%s168 + $0x78] sm:$0xff]
        %v215 = vld [vmem:[%s168 + $0x80] sm:$0xff]
        %v216 = vld [vmem:[%s168 + $0x88] sm:$0xff]
        %v217 = vld [vmem:[%s168 + $0x90] sm:$0xff]
        %v218 = vld [vmem:[%s168 + $0x98] sm:$0xff]
        %v219 = vld [vmem:[%s168 + $0xa0] sm:$0xff]
        %v220 = vld [vmem:[%s168 + $0xa8] sm:$0xff]
        %v221 = vld [vmem:[%s168 + $0xb0] sm:$0xff]
        %v222 = vld [vmem:[%s168 + $0xb8] sm:$0xff]
        %v223 = vld [vmem:[%s168 + $0xc0] sm:$0xff]
        %v224 = vld [vmem:[%s168 + $0xc8] sm:$0xff]
        %v225 = vld [vmem:[%s168 + $0xd0] sm:$0xff]
        %v226 = vld [vmem:[%s168 + $0xd8] sm:$0xff]
        %v227 = vld [vmem:[%s168 + $0xe0] sm:$0xff]
        %v228 = vld [vmem:[%s168 + $0xe8] sm:$0xff]
        %v229 = vld [vmem:[%s168 + $0xf0] sm:$0xff]
        %v230 = vld [vmem:[%s168 + $0xf8] sm:$0xff]
        %v231 = vstv %s198
        %v232 = vmul.f32 %v199, %v231
        %v233 = vmul.f32 %v200, %v231
        %v234 = vmul.f32 %v201, %v231
        %v235 = vmul.f32 %v202, %v231
        %v236 = vmul.f32 %v203, %v231
        %v237 = vmul.f32 %v204, %v231
        %v238 = vmul.f32 %v205, %v231
        %v239 = vmul.f32 %v206, %v231
        %v240 = vmul.f32 %v207, %v231
        %v241 = vmul.f32 %v208, %v231
        %v242 = vmul.f32 %v209, %v231
        %v243 = vmul.f32 %v210, %v231
        %v244 = vmul.f32 %v211, %v231
        %v245 = vmul.f32 %v212, %v231
        %v246 = vmul.f32 %v213, %v231
        %v247 = vmul.f32 %v214, %v231
        %v248 = vmul.f32 %v215, %v231
        %v249 = vmul.f32 %v216, %v231
        %v250 = vmul.f32 %v217, %v231
        %v251 = vmul.f32 %v218, %v231
        %v252 = vmul.f32 %v219, %v231
        %v253 = vmul.f32 %v220, %v231
        %v254 = vmul.f32 %v221, %v231
        %v255 = vmul.f32 %v222, %v231
        %v256 = vmul.f32 %v223, %v231
        %v257 = vmul.f32 %v224, %v231
        %v258 = vmul.f32 %v225, %v231
        %v259 = vmul.f32 %v226, %v231
        %v260 = vmul.f32 %v227, %v231
        %v261 = vmul.f32 %v228, %v231
        %v262 = vmul.f32 %v229, %v231
        %v263 = vmul.f32 %v230, %v231
        %s264 = smul.u32 %s24, 128
        %v265 = vlaneseq
        %v266 = vshrl.u32 %v265, 7
        %v267 = vadd.s32 %v266, 8
        %v268 = vadd.s32 %v266, 16
        %v269 = vadd.s32 %v266, 24
        %v270 = vadd.s32 %v266, 32
        %v271 = vadd.s32 %v266, 40
        %v272 = vadd.s32 %v266, 48
        %v273 = vadd.s32 %v266, 56
        %v274 = vadd.s32 %v266, 64
        %v275 = vadd.s32 %v266, 72
        %v276 = vadd.s32 %v266, 80
        %v277 = vadd.s32 %v266, 88
        %v278 = vadd.s32 %v266, 96
        %v279 = vadd.s32 %v266, 104
        %v280 = vadd.s32 %v266, 112
        %v281 = vadd.s32 %v266, 120
        %v282 = vstv %s264
        %v283 = vadd.s32 %v282, %v266
        %v284 = vadd.s32 %v282, %v267
        %v285 = vadd.s32 %v282, %v268
        %v286 = vadd.s32 %v282, %v269
        %v287 = vadd.s32 %v282, %v270
        %v288 = vadd.s32 %v282, %v271
        %v289 = vadd.s32 %v282, %v272
        %v290 = vadd.s32 %v282, %v273
        %v291 = vadd.s32 %v282, %v274
        %v292 = vadd.s32 %v282, %v275
        %v293 = vadd.s32 %v282, %v276
        %v294 = vadd.s32 %v282, %v277
        %v295 = vadd.s32 %v282, %v278
        %v296 = vadd.s32 %v282, %v279
        %v297 = vadd.s32 %v282, %v280
        %v298 = vadd.s32 %v282, %v281
        %vm299 = vcmp.lt.s32.totalorder %v283, 144
        %vm300 = vcmp.lt.s32.totalorder %v284, 144
        %vm301 = vcmp.lt.s32.totalorder %v285, 144
        %vm302 = vcmp.lt.s32.totalorder %v286, 144
        %vm303 = vcmp.lt.s32.totalorder %v287, 144
        %vm304 = vcmp.lt.s32.totalorder %v288, 144
        %vm305 = vcmp.lt.s32.totalorder %v289, 144
        %vm306 = vcmp.lt.s32.totalorder %v290, 144
        %vm307 = vcmp.lt.s32.totalorder %v291, 144
        %vm308 = vcmp.lt.s32.totalorder %v292, 144
        %vm309 = vcmp.lt.s32.totalorder %v293, 144
        %vm310 = vcmp.lt.s32.totalorder %v294, 144
        %vm311 = vcmp.lt.s32.totalorder %v295, 144
        %vm312 = vcmp.lt.s32.totalorder %v296, 144
        %vm313 = vcmp.lt.s32.totalorder %v297, 144
        %vm314 = vcmp.lt.s32.totalorder %v298, 144
        %v315 = vsel %vm299, %v232, 0.0
        %v316 = vsel %vm299, %v233, 0.0
        %v317 = vsel %vm300, %v234, 0.0
        %v318 = vsel %vm300, %v235, 0.0
        %v319 = vsel %vm301, %v236, 0.0
        %v320 = vsel %vm301, %v237, 0.0
        %v321 = vsel %vm302, %v238, 0.0
        %v322 = vsel %vm302, %v239, 0.0
        %v323 = vsel %vm303, %v240, 0.0
        %v324 = vsel %vm303, %v241, 0.0
        %v325 = vsel %vm304, %v242, 0.0
        %v326 = vsel %vm304, %v243, 0.0
        %v327 = vsel %vm305, %v244, 0.0
        %v328 = vsel %vm305, %v245, 0.0
        %v329 = vsel %vm306, %v246, 0.0
        %v330 = vsel %vm306, %v247, 0.0
        %v331 = vsel %vm307, %v248, 0.0
        %v332 = vsel %vm307, %v249, 0.0
        %v333 = vsel %vm308, %v250, 0.0
        %v334 = vsel %vm308, %v251, 0.0
        %v335 = vsel %vm309, %v252, 0.0
        %v336 = vsel %vm309, %v253, 0.0
        %v337 = vsel %vm310, %v254, 0.0
        %v338 = vsel %vm310, %v255, 0.0
        %v339 = vsel %vm311, %v256, 0.0
        %v340 = vsel %vm311, %v257, 0.0
        %v341 = vsel %vm312, %v258, 0.0
        %v342 = vsel %vm312, %v259, 0.0
        %v343 = vsel %vm313, %v260, 0.0
        %v344 = vsel %vm313, %v261, 0.0
        %v345 = vsel %vm314, %v262, 0.0
        %v346 = vsel %vm314, %v263, 0.0
        %v347 = vand.u32 2147483647, %v315
        %v348 = vand.u32 %v315, 2147483648
        %v350 = vadd.f32 1182793728, %v347
        %v352 = vsub.s32 %v350, 1182793728
        %v353 = vshrl.u32 %v315, 20
        %v354 = vand.u32 %v353, 1
        %v355 = vadd.s32 %v347, 3288858623
        %v356 = vadd.s32 %v355, %v354
        %v357 = vshrl.u32 %v356, 20
        %vm358 = vcmp.lt.s32.totalorder %v347, 1015021568
        %v359 = vsel %vm358, %v352, %v357
        %vm360 = vcmp.ge.s32.totalorder %v347, 1139277825
        %v361 = vsel %vm360, 127, %v359
        %vm362 = vcmp.ne.f32.partialorder %v315, %v315
        %v363 = vsel %vm362, 127, %v361
        %v364 = vshrl.u32 %v348, 24
        %v365 = vor.u32 %v363, %v364
        %v366 = vor.u32 %v365, 4294967040
        %v368 = vand.u32 2147483647, %v317
        %v369 = vand.u32 %v317, 2147483648
        %v371 = vadd.f32 1182793728, %v368
        %v373 = vsub.s32 %v371, 1182793728
        %v374 = vshrl.u32 %v317, 20
        %v375 = vand.u32 %v374, 1
        %v376 = vadd.s32 %v368, 3288858623
        %v377 = vadd.s32 %v376, %v375
        %v378 = vshrl.u32 %v377, 20
        %vm379 = vcmp.lt.s32.totalorder %v368, 1015021568
        %v380 = vsel %vm379, %v373, %v378
        %vm381 = vcmp.ge.s32.totalorder %v368, 1139277825
        %v382 = vsel %vm381, 127, %v380
        %vm383 = vcmp.ne.f32.partialorder %v317, %v317
        %v384 = vsel %vm383, 127, %v382
        %v385 = vshrl.u32 %v369, 24
        %v386 = vor.u32 %v384, %v385
        %v387 = vor.u32 %v386, 4294967040
        %v389 = vand.u32 2147483647, %v319
        %v390 = vand.u32 %v319, 2147483648
        %v392 = vadd.f32 1182793728, %v389
        %v394 = vsub.s32 %v392, 1182793728
        %v395 = vshrl.u32 %v319, 20
        %v396 = vand.u32 %v395, 1
        %v397 = vadd.s32 %v389, 3288858623
        %v398 = vadd.s32 %v397, %v396
        %v399 = vshrl.u32 %v398, 20
        %vm400 = vcmp.lt.s32.totalorder %v389, 1015021568
        %v401 = vsel %vm400, %v394, %v399
        %vm402 = vcmp.ge.s32.totalorder %v389, 1139277825
        %v403 = vsel %vm402, 127, %v401
        %vm404 = vcmp.ne.f32.partialorder %v319, %v319
        %v405 = vsel %vm404, 127, %v403
        %v406 = vshrl.u32 %v390, 24
        %v407 = vor.u32 %v405, %v406
        %v408 = vor.u32 %v407, 4294967040
        %v410 = vand.u32 2147483647, %v321
        %v411 = vand.u32 %v321, 2147483648
        %v413 = vadd.f32 1182793728, %v410
        %v415 = vsub.s32 %v413, 1182793728
        %v416 = vshrl.u32 %v321, 20
        %v417 = vand.u32 %v416, 1
        %v418 = vadd.s32 %v410, 3288858623
        %v419 = vadd.s32 %v418, %v417
        %v420 = vshrl.u32 %v419, 20
        %vm421 = vcmp.lt.s32.totalorder %v410, 1015021568
        %v422 = vsel %vm421, %v415, %v420
        %vm423 = vcmp.ge.s32.totalorder %v410, 1139277825
        %v424 = vsel %vm423, 127, %v422
        %vm425 = vcmp.ne.f32.partialorder %v321, %v321
        %v426 = vsel %vm425, 127, %v424
        %v427 = vshrl.u32 %v411, 24
        %v428 = vor.u32 %v426, %v427
        %v429 = vor.u32 %v428, 4294967040
        %v431 = vpack.c.b16 %v387, %v366
        %v432 = vpack.c.b16 %v429, %v408
        %v433 = vpack.c.b8 %v432, %v431
        %v435 = vand.u32 2147483647, %v316
        %v436 = vand.u32 %v316, 2147483648
        %v438 = vadd.f32 1182793728, %v435
        %v440 = vsub.s32 %v438, 1182793728
        %v441 = vshrl.u32 %v316, 20
        %v442 = vand.u32 %v441, 1
        %v443 = vadd.s32 %v435, 3288858623
        %v444 = vadd.s32 %v443, %v442
        %v445 = vshrl.u32 %v444, 20
        %vm446 = vcmp.lt.s32.totalorder %v435, 1015021568
        %v447 = vsel %vm446, %v440, %v445
        %vm448 = vcmp.ge.s32.totalorder %v435, 1139277825
        %v449 = vsel %vm448, 127, %v447
        %vm450 = vcmp.ne.f32.partialorder %v316, %v316
        %v451 = vsel %vm450, 127, %v449
        %v452 = vshrl.u32 %v436, 24
        %v453 = vor.u32 %v451, %v452
        %v454 = vor.u32 %v453, 4294967040
        %v456 = vand.u32 2147483647, %v318
        %v457 = vand.u32 %v318, 2147483648
        %v459 = vadd.f32 1182793728, %v456
        %v461 = vsub.s32 %v459, 1182793728
        %v462 = vshrl.u32 %v318, 20
        %v463 = vand.u32 %v462, 1
        %v464 = vadd.s32 %v456, 3288858623
        %v465 = vadd.s32 %v464, %v463
        %v466 = vshrl.u32 %v465, 20
        %vm467 = vcmp.lt.s32.totalorder %v456, 1015021568
        %v468 = vsel %vm467, %v461, %v466
        %vm469 = vcmp.ge.s32.totalorder %v456, 1139277825
        %v470 = vsel %vm469, 127, %v468
        %vm471 = vcmp.ne.f32.partialorder %v318, %v318
        %v472 = vsel %vm471, 127, %v470
        %v473 = vshrl.u32 %v457, 24
        %v474 = vor.u32 %v472, %v473
        %v475 = vor.u32 %v474, 4294967040
        %v477 = vand.u32 2147483647, %v320
        %v478 = vand.u32 %v320, 2147483648
        %v480 = vadd.f32 1182793728, %v477
        %v482 = vsub.s32 %v480, 1182793728
        %v483 = vshrl.u32 %v320, 20
        %v484 = vand.u32 %v483, 1
        %v485 = vadd.s32 %v477, 3288858623
        %v486 = vadd.s32 %v485, %v484
        %v487 = vshrl.u32 %v486, 20
        %vm488 = vcmp.lt.s32.totalorder %v477, 1015021568
        %v489 = vsel %vm488, %v482, %v487
        %vm490 = vcmp.ge.s32.totalorder %v477, 1139277825
        %v491 = vsel %vm490, 127, %v489
        %vm492 = vcmp.ne.f32.partialorder %v320, %v320
        %v493 = vsel %vm492, 127, %v491
        %v494 = vshrl.u32 %v478, 24
        %v495 = vor.u32 %v493, %v494
        %v496 = vor.u32 %v495, 4294967040
        %v498 = vand.u32 2147483647, %v322
        %v499 = vand.u32 %v322, 2147483648
        %v501 = vadd.f32 1182793728, %v498
        %v503 = vsub.s32 %v501, 1182793728
        %v504 = vshrl.u32 %v322, 20
        %v505 = vand.u32 %v504, 1
        %v506 = vadd.s32 %v498, 3288858623
        %v507 = vadd.s32 %v506, %v505
        %v508 = vshrl.u32 %v507, 20
        %vm509 = vcmp.lt.s32.totalorder %v498, 1015021568
        %v510 = vsel %vm509, %v503, %v508
        %vm511 = vcmp.ge.s32.totalorder %v498, 1139277825
        %v512 = vsel %vm511, 127, %v510
        %vm513 = vcmp.ne.f32.partialorder %v322, %v322
        %v514 = vsel %vm513, 127, %v512
        %v515 = vshrl.u32 %v499, 24
        %v516 = vor.u32 %v514, %v515
        %v517 = vor.u32 %v516, 4294967040
        %v519 = vpack.c.b16 %v475, %v454
        %v520 = vpack.c.b16 %v517, %v496
        %v521 = vpack.c.b8 %v520, %v519
        %v523 = vand.u32 2147483647, %v323
        %v524 = vand.u32 %v323, 2147483648
        %v526 = vadd.f32 1182793728, %v523
        %v528 = vsub.s32 %v526, 1182793728
        %v529 = vshrl.u32 %v323, 20
        %v530 = vand.u32 %v529, 1
        %v531 = vadd.s32 %v523, 3288858623
        %v532 = vadd.s32 %v531, %v530
        %v533 = vshrl.u32 %v532, 20
        %vm534 = vcmp.lt.s32.totalorder %v523, 1015021568
        %v535 = vsel %vm534, %v528, %v533
        %vm536 = vcmp.ge.s32.totalorder %v523, 1139277825
        %v537 = vsel %vm536, 127, %v535
        %vm538 = vcmp.ne.f32.partialorder %v323, %v323
        %v539 = vsel %vm538, 127, %v537
        %v540 = vshrl.u32 %v524, 24
        %v541 = vor.u32 %v539, %v540
        %v542 = vor.u32 %v541, 4294967040
        %v544 = vand.u32 2147483647, %v325
        %v545 = vand.u32 %v325, 2147483648
        %v547 = vadd.f32 1182793728, %v544
        %v549 = vsub.s32 %v547, 1182793728
        %v550 = vshrl.u32 %v325, 20
        %v551 = vand.u32 %v550, 1
        %v552 = vadd.s32 %v544, 3288858623
        %v553 = vadd.s32 %v552, %v551
        %v554 = vshrl.u32 %v553, 20
        %vm555 = vcmp.lt.s32.totalorder %v544, 1015021568
        %v556 = vsel %vm555, %v549, %v554
        %vm557 = vcmp.ge.s32.totalorder %v544, 1139277825
        %v558 = vsel %vm557, 127, %v556
        %vm559 = vcmp.ne.f32.partialorder %v325, %v325
        %v560 = vsel %vm559, 127, %v558
        %v561 = vshrl.u32 %v545, 24
        %v562 = vor.u32 %v560, %v561
        %v563 = vor.u32 %v562, 4294967040
        %v565 = vand.u32 2147483647, %v327
        %v566 = vand.u32 %v327, 2147483648
        %v568 = vadd.f32 1182793728, %v565
        %v570 = vsub.s32 %v568, 1182793728
        %v571 = vshrl.u32 %v327, 20
        %v572 = vand.u32 %v571, 1
        %v573 = vadd.s32 %v565, 3288858623
        %v574 = vadd.s32 %v573, %v572
        %v575 = vshrl.u32 %v574, 20
        %vm576 = vcmp.lt.s32.totalorder %v565, 1015021568
        %v577 = vsel %vm576, %v570, %v575
        %vm578 = vcmp.ge.s32.totalorder %v565, 1139277825
        %v579 = vsel %vm578, 127, %v577
        %vm580 = vcmp.ne.f32.partialorder %v327, %v327
        %v581 = vsel %vm580, 127, %v579
        %v582 = vshrl.u32 %v566, 24
        %v583 = vor.u32 %v581, %v582
        %v584 = vor.u32 %v583, 4294967040
        %v586 = vand.u32 2147483647, %v329
        %v587 = vand.u32 %v329, 2147483648
        %v589 = vadd.f32 1182793728, %v586
        %v591 = vsub.s32 %v589, 1182793728
        %v592 = vshrl.u32 %v329, 20
        %v593 = vand.u32 %v592, 1
        %v594 = vadd.s32 %v586, 3288858623
        %v595 = vadd.s32 %v594, %v593
        %v596 = vshrl.u32 %v595, 20
        %vm597 = vcmp.lt.s32.totalorder %v586, 1015021568
        %v598 = vsel %vm597, %v591, %v596
        %vm599 = vcmp.ge.s32.totalorder %v586, 1139277825
        %v600 = vsel %vm599, 127, %v598
        %vm601 = vcmp.ne.f32.partialorder %v329, %v329
        %v602 = vsel %vm601, 127, %v600
        %v603 = vshrl.u32 %v587, 24
        %v604 = vor.u32 %v602, %v603
        %v605 = vor.u32 %v604, 4294967040
        %v607 = vpack.c.b16 %v563, %v542
        %v608 = vpack.c.b16 %v605, %v584
        %v609 = vpack.c.b8 %v608, %v607
        %v611 = vand.u32 2147483647, %v324
        %v612 = vand.u32 %v324, 2147483648
        %v614 = vadd.f32 1182793728, %v611
        %v616 = vsub.s32 %v614, 1182793728
        %v617 = vshrl.u32 %v324, 20
        %v618 = vand.u32 %v617, 1
        %v619 = vadd.s32 %v611, 3288858623
        %v620 = vadd.s32 %v619, %v618
        %v621 = vshrl.u32 %v620, 20
        %vm622 = vcmp.lt.s32.totalorder %v611, 1015021568
        %v623 = vsel %vm622, %v616, %v621
        %vm624 = vcmp.ge.s32.totalorder %v611, 1139277825
        %v625 = vsel %vm624, 127, %v623
        %vm626 = vcmp.ne.f32.partialorder %v324, %v324
        %v627 = vsel %vm626, 127, %v625
        %v628 = vshrl.u32 %v612, 24
        %v629 = vor.u32 %v627, %v628
        %v630 = vor.u32 %v629, 4294967040
        %v632 = vand.u32 2147483647, %v326
        %v633 = vand.u32 %v326, 2147483648
        %v635 = vadd.f32 1182793728, %v632
        %v637 = vsub.s32 %v635, 1182793728
        %v638 = vshrl.u32 %v326, 20
        %v639 = vand.u32 %v638, 1
        %v640 = vadd.s32 %v632, 3288858623
        %v641 = vadd.s32 %v640, %v639
        %v642 = vshrl.u32 %v641, 20
        %vm643 = vcmp.lt.s32.totalorder %v632, 1015021568
        %v644 = vsel %vm643, %v637, %v642
        %vm645 = vcmp.ge.s32.totalorder %v632, 1139277825
        %v646 = vsel %vm645, 127, %v644
        %vm647 = vcmp.ne.f32.partialorder %v326, %v326
        %v648 = vsel %vm647, 127, %v646
        %v649 = vshrl.u32 %v633, 24
        %v650 = vor.u32 %v648, %v649
        %v651 = vor.u32 %v650, 4294967040
        %v653 = vand.u32 2147483647, %v328
        %v654 = vand.u32 %v328, 2147483648
        %v656 = vadd.f32 1182793728, %v653
        %v658 = vsub.s32 %v656, 1182793728
        %v659 = vshrl.u32 %v328, 20
        %v660 = vand.u32 %v659, 1
        %v661 = vadd.s32 %v653, 3288858623
        %v662 = vadd.s32 %v661, %v660
        %v663 = vshrl.u32 %v662, 20
        %vm664 = vcmp.lt.s32.totalorder %v653, 1015021568
        %v665 = vsel %vm664, %v658, %v663
        %vm666 = vcmp.ge.s32.totalorder %v653, 1139277825
        %v667 = vsel %vm666, 127, %v665
        %vm668 = vcmp.ne.f32.partialorder %v328, %v328
        %v669 = vsel %vm668, 127, %v667
        %v670 = vshrl.u32 %v654, 24
        %v671 = vor.u32 %v669, %v670
        %v672 = vor.u32 %v671, 4294967040
        %v674 = vand.u32 2147483647, %v330
        %v675 = vand.u32 %v330, 2147483648
        %v677 = vadd.f32 1182793728, %v674
        %v679 = vsub.s32 %v677, 1182793728
        %v680 = vshrl.u32 %v330, 20
        %v681 = vand.u32 %v680, 1
        %v682 = vadd.s32 %v674, 3288858623
        %v683 = vadd.s32 %v682, %v681
        %v684 = vshrl.u32 %v683, 20
        %vm685 = vcmp.lt.s32.totalorder %v674, 1015021568
        %v686 = vsel %vm685, %v679, %v684
        %vm687 = vcmp.ge.s32.totalorder %v674, 1139277825
        %v688 = vsel %vm687, 127, %v686
        %vm689 = vcmp.ne.f32.partialorder %v330, %v330
        %v690 = vsel %vm689, 127, %v688
        %v691 = vshrl.u32 %v675, 24
        %v692 = vor.u32 %v690, %v691
        %v693 = vor.u32 %v692, 4294967040
        %v695 = vpack.c.b16 %v651, %v630
        %v696 = vpack.c.b16 %v693, %v672
        %v697 = vpack.c.b8 %v696, %v695
        %v699 = vand.u32 2147483647, %v331
        %v700 = vand.u32 %v331, 2147483648
        %v702 = vadd.f32 1182793728, %v699
        %v704 = vsub.s32 %v702, 1182793728
        %v705 = vshrl.u32 %v331, 20
        %v706 = vand.u32 %v705, 1
        %v707 = vadd.s32 %v699, 3288858623
        %v708 = vadd.s32 %v707, %v706
        %v709 = vshrl.u32 %v708, 20
        %vm710 = vcmp.lt.s32.totalorder %v699, 1015021568
        %v711 = vsel %vm710, %v704, %v709
        %vm712 = vcmp.ge.s32.totalorder %v699, 1139277825
        %v713 = vsel %vm712, 127, %v711
        %vm714 = vcmp.ne.f32.partialorder %v331, %v331
        %v715 = vsel %vm714, 127, %v713
        %v716 = vshrl.u32 %v700, 24
        %v717 = vor.u32 %v715, %v716
        %v718 = vor.u32 %v717, 4294967040
        %v720 = vand.u32 2147483647, %v333
        %v721 = vand.u32 %v333, 2147483648
        %v723 = vadd.f32 1182793728, %v720
        %v725 = vsub.s32 %v723, 1182793728
        %v726 = vshrl.u32 %v333, 20
        %v727 = vand.u32 %v726, 1
        %v728 = vadd.s32 %v720, 3288858623
        %v729 = vadd.s32 %v728, %v727
        %v730 = vshrl.u32 %v729, 20
        %vm731 = vcmp.lt.s32.totalorder %v720, 1015021568
        %v732 = vsel %vm731, %v725, %v730
        %vm733 = vcmp.ge.s32.totalorder %v720, 1139277825
        %v734 = vsel %vm733, 127, %v732
        %vm735 = vcmp.ne.f32.partialorder %v333, %v333
        %v736 = vsel %vm735, 127, %v734
        %v737 = vshrl.u32 %v721, 24
        %v738 = vor.u32 %v736, %v737
        %v739 = vor.u32 %v738, 4294967040
        %v741 = vand.u32 2147483647, %v335
        %v742 = vand.u32 %v335, 2147483648
        %v744 = vadd.f32 1182793728, %v741
        %v746 = vsub.s32 %v744, 1182793728
        %v747 = vshrl.u32 %v335, 20
        %v748 = vand.u32 %v747, 1
        %v749 = vadd.s32 %v741, 3288858623
        %v750 = vadd.s32 %v749, %v748
        %v751 = vshrl.u32 %v750, 20
        %vm752 = vcmp.lt.s32.totalorder %v741, 1015021568
        %v753 = vsel %vm752, %v746, %v751
        %vm754 = vcmp.ge.s32.totalorder %v741, 1139277825
        %v755 = vsel %vm754, 127, %v753
        %vm756 = vcmp.ne.f32.partialorder %v335, %v335
        %v757 = vsel %vm756, 127, %v755
        %v758 = vshrl.u32 %v742, 24
        %v759 = vor.u32 %v757, %v758
        %v760 = vor.u32 %v759, 4294967040
        %v762 = vand.u32 2147483647, %v337
        %v763 = vand.u32 %v337, 2147483648
        %v765 = vadd.f32 1182793728, %v762
        %v767 = vsub.s32 %v765, 1182793728
        %v768 = vshrl.u32 %v337, 20
        %v769 = vand.u32 %v768, 1
        %v770 = vadd.s32 %v762, 3288858623
        %v771 = vadd.s32 %v770, %v769
        %v772 = vshrl.u32 %v771, 20
        %vm773 = vcmp.lt.s32.totalorder %v762, 1015021568
        %v774 = vsel %vm773, %v767, %v772
        %vm775 = vcmp.ge.s32.totalorder %v762, 1139277825
        %v776 = vsel %vm775, 127, %v774
        %vm777 = vcmp.ne.f32.partialorder %v337, %v337
        %v778 = vsel %vm777, 127, %v776
        %v779 = vshrl.u32 %v763, 24
        %v780 = vor.u32 %v778, %v779
        %v781 = vor.u32 %v780, 4294967040
        %v783 = vpack.c.b16 %v739, %v718
        %v784 = vpack.c.b16 %v781, %v760
        %v785 = vpack.c.b8 %v784, %v783
        %v787 = vand.u32 2147483647, %v332
        %v788 = vand.u32 %v332, 2147483648
        %v790 = vadd.f32 1182793728, %v787
        %v792 = vsub.s32 %v790, 1182793728
        %v793 = vshrl.u32 %v332, 20
        %v794 = vand.u32 %v793, 1
        %v795 = vadd.s32 %v787, 3288858623
        %v796 = vadd.s32 %v795, %v794
        %v797 = vshrl.u32 %v796, 20
        %vm798 = vcmp.lt.s32.totalorder %v787, 1015021568
        %v799 = vsel %vm798, %v792, %v797
        %vm800 = vcmp.ge.s32.totalorder %v787, 1139277825
        %v801 = vsel %vm800, 127, %v799
        %vm802 = vcmp.ne.f32.partialorder %v332, %v332
        %v803 = vsel %vm802, 127, %v801
        %v804 = vshrl.u32 %v788, 24
        %v805 = vor.u32 %v803, %v804
        %v806 = vor.u32 %v805, 4294967040
        %v808 = vand.u32 2147483647, %v334
        %v809 = vand.u32 %v334, 2147483648
        %v811 = vadd.f32 1182793728, %v808
        %v813 = vsub.s32 %v811, 1182793728
        %v814 = vshrl.u32 %v334, 20
        %v815 = vand.u32 %v814, 1
        %v816 = vadd.s32 %v808, 3288858623
        %v817 = vadd.s32 %v816, %v815
        %v818 = vshrl.u32 %v817, 20
        %vm819 = vcmp.lt.s32.totalorder %v808, 1015021568
        %v820 = vsel %vm819, %v813, %v818
        %vm821 = vcmp.ge.s32.totalorder %v808, 1139277825
        %v822 = vsel %vm821, 127, %v820
        %vm823 = vcmp.ne.f32.partialorder %v334, %v334
        %v824 = vsel %vm823, 127, %v822
        %v825 = vshrl.u32 %v809, 24
        %v826 = vor.u32 %v824, %v825
        %v827 = vor.u32 %v826, 4294967040
        %v829 = vand.u32 2147483647, %v336
        %v830 = vand.u32 %v336, 2147483648
        %v832 = vadd.f32 1182793728, %v829
        %v834 = vsub.s32 %v832, 1182793728
        %v835 = vshrl.u32 %v336, 20
        %v836 = vand.u32 %v835, 1
        %v837 = vadd.s32 %v829, 3288858623
        %v838 = vadd.s32 %v837, %v836
        %v839 = vshrl.u32 %v838, 20
        %vm840 = vcmp.lt.s32.totalorder %v829, 1015021568
        %v841 = vsel %vm840, %v834, %v839
        %vm842 = vcmp.ge.s32.totalorder %v829, 1139277825
        %v843 = vsel %vm842, 127, %v841
        %vm844 = vcmp.ne.f32.partialorder %v336, %v336
        %v845 = vsel %vm844, 127, %v843
        %v846 = vshrl.u32 %v830, 24
        %v847 = vor.u32 %v845, %v846
        %v848 = vor.u32 %v847, 4294967040
        %v850 = vand.u32 2147483647, %v338
        %v851 = vand.u32 %v338, 2147483648
        %v853 = vadd.f32 1182793728, %v850
        %v855 = vsub.s32 %v853, 1182793728
        %v856 = vshrl.u32 %v338, 20
        %v857 = vand.u32 %v856, 1
        %v858 = vadd.s32 %v850, 3288858623
        %v859 = vadd.s32 %v858, %v857
        %v860 = vshrl.u32 %v859, 20
        %vm861 = vcmp.lt.s32.totalorder %v850, 1015021568
        %v862 = vsel %vm861, %v855, %v860
        %vm863 = vcmp.ge.s32.totalorder %v850, 1139277825
        %v864 = vsel %vm863, 127, %v862
        %vm865 = vcmp.ne.f32.partialorder %v338, %v338
        %v866 = vsel %vm865, 127, %v864
        %v867 = vshrl.u32 %v851, 24
        %v868 = vor.u32 %v866, %v867
        %v869 = vor.u32 %v868, 4294967040
        %v871 = vpack.c.b16 %v827, %v806
        %v872 = vpack.c.b16 %v869, %v848
        %v873 = vpack.c.b8 %v872, %v871
        %v875 = vand.u32 2147483647, %v339
        %v876 = vand.u32 %v339, 2147483648
        %v878 = vadd.f32 1182793728, %v875
        %v880 = vsub.s32 %v878, 1182793728
        %v881 = vshrl.u32 %v339, 20
        %v882 = vand.u32 %v881, 1
        %v883 = vadd.s32 %v875, 3288858623
        %v884 = vadd.s32 %v883, %v882
        %v885 = vshrl.u32 %v884, 20
        %vm886 = vcmp.lt.s32.totalorder %v875, 1015021568
        %v887 = vsel %vm886, %v880, %v885
        %vm888 = vcmp.ge.s32.totalorder %v875, 1139277825
        %v889 = vsel %vm888, 127, %v887
        %vm890 = vcmp.ne.f32.partialorder %v339, %v339
        %v891 = vsel %vm890, 127, %v889
        %v892 = vshrl.u32 %v876, 24
        %v893 = vor.u32 %v891, %v892
        %v894 = vor.u32 %v893, 4294967040
        %v896 = vand.u32 2147483647, %v341
        %v897 = vand.u32 %v341, 2147483648
        %v899 = vadd.f32 1182793728, %v896
        %v901 = vsub.s32 %v899, 1182793728
        %v902 = vshrl.u32 %v341, 20
        %v903 = vand.u32 %v902, 1
        %v904 = vadd.s32 %v896, 3288858623
        %v905 = vadd.s32 %v904, %v903
        %v906 = vshrl.u32 %v905, 20
        %vm907 = vcmp.lt.s32.totalorder %v896, 1015021568
        %v908 = vsel %vm907, %v901, %v906
        %vm909 = vcmp.ge.s32.totalorder %v896, 1139277825
        %v910 = vsel %vm909, 127, %v908
        %vm911 = vcmp.ne.f32.partialorder %v341, %v341
        %v912 = vsel %vm911, 127, %v910
        %v913 = vshrl.u32 %v897, 24
        %v914 = vor.u32 %v912, %v913
        %v915 = vor.u32 %v914, 4294967040
        %v917 = vand.u32 2147483647, %v343
        %v918 = vand.u32 %v343, 2147483648
        %v920 = vadd.f32 1182793728, %v917
        %v922 = vsub.s32 %v920, 1182793728
        %v923 = vshrl.u32 %v343, 20
        %v924 = vand.u32 %v923, 1
        %v925 = vadd.s32 %v917, 3288858623
        %v926 = vadd.s32 %v925, %v924
        %v927 = vshrl.u32 %v926, 20
        %vm928 = vcmp.lt.s32.totalorder %v917, 1015021568
        %v929 = vsel %vm928, %v922, %v927
        %vm930 = vcmp.ge.s32.totalorder %v917, 1139277825
        %v931 = vsel %vm930, 127, %v929
        %vm932 = vcmp.ne.f32.partialorder %v343, %v343
        %v933 = vsel %vm932, 127, %v931
        %v934 = vshrl.u32 %v918, 24
        %v935 = vor.u32 %v933, %v934
        %v936 = vor.u32 %v935, 4294967040
        %v938 = vand.u32 2147483647, %v345
        %v939 = vand.u32 %v345, 2147483648
        %v941 = vadd.f32 1182793728, %v938
        %v943 = vsub.s32 %v941, 1182793728
        %v944 = vshrl.u32 %v345, 20
        %v945 = vand.u32 %v944, 1
        %v946 = vadd.s32 %v938, 3288858623
        %v947 = vadd.s32 %v946, %v945
        %v948 = vshrl.u32 %v947, 20
        %vm949 = vcmp.lt.s32.totalorder %v938, 1015021568
        %v950 = vsel %vm949, %v943, %v948
        %vm951 = vcmp.ge.s32.totalorder %v938, 1139277825
        %v952 = vsel %vm951, 127, %v950
        %vm953 = vcmp.ne.f32.partialorder %v345, %v345
        %v954 = vsel %vm953, 127, %v952
        %v955 = vshrl.u32 %v939, 24
        %v956 = vor.u32 %v954, %v955
        %v957 = vor.u32 %v956, 4294967040
        %v959 = vpack.c.b16 %v915, %v894
        %v960 = vpack.c.b16 %v957, %v936
        %v961 = vpack.c.b8 %v960, %v959
        %v963 = vand.u32 2147483647, %v340
        %v964 = vand.u32 %v340, 2147483648
        %v966 = vadd.f32 1182793728, %v963
        %v968 = vsub.s32 %v966, 1182793728
        %v969 = vshrl.u32 %v340, 20
        %v970 = vand.u32 %v969, 1
        %v971 = vadd.s32 %v963, 3288858623
        %v972 = vadd.s32 %v971, %v970
        %v973 = vshrl.u32 %v972, 20
        %vm974 = vcmp.lt.s32.totalorder %v963, 1015021568
        %v975 = vsel %vm974, %v968, %v973
        %vm976 = vcmp.ge.s32.totalorder %v963, 1139277825
        %v977 = vsel %vm976, 127, %v975
        %vm978 = vcmp.ne.f32.partialorder %v340, %v340
        %v979 = vsel %vm978, 127, %v977
        %v980 = vshrl.u32 %v964, 24
        %v981 = vor.u32 %v979, %v980
        %v982 = vor.u32 %v981, 4294967040
        %v984 = vand.u32 2147483647, %v342
        %v985 = vand.u32 %v342, 2147483648
        %v987 = vadd.f32 1182793728, %v984
        %v989 = vsub.s32 %v987, 1182793728
        %v990 = vshrl.u32 %v342, 20
        %v991 = vand.u32 %v990, 1
        %v992 = vadd.s32 %v984, 3288858623
        %v993 = vadd.s32 %v992, %v991
        %v994 = vshrl.u32 %v993, 20
        %vm995 = vcmp.lt.s32.totalorder %v984, 1015021568
        %v996 = vsel %vm995, %v989, %v994
        %vm997 = vcmp.ge.s32.totalorder %v984, 1139277825
        %v998 = vsel %vm997, 127, %v996
        %vm999 = vcmp.ne.f32.partialorder %v342, %v342
        %v1000 = vsel %vm999, 127, %v998
        %v1001 = vshrl.u32 %v985, 24
        %v1002 = vor.u32 %v1000, %v1001
        %v1003 = vor.u32 %v1002, 4294967040
        %v1005 = vand.u32 2147483647, %v344
        %v1006 = vand.u32 %v344, 2147483648
        %v1008 = vadd.f32 1182793728, %v1005
        %v1010 = vsub.s32 %v1008, 1182793728
        %v1011 = vshrl.u32 %v344, 20
        %v1012 = vand.u32 %v1011, 1
        %v1013 = vadd.s32 %v1005, 3288858623
        %v1014 = vadd.s32 %v1013, %v1012
        %v1015 = vshrl.u32 %v1014, 20
        %vm1016 = vcmp.lt.s32.totalorder %v1005, 1015021568
        %v1017 = vsel %vm1016, %v1010, %v1015
        %vm1018 = vcmp.ge.s32.totalorder %v1005, 1139277825
        %v1019 = vsel %vm1018, 127, %v1017
        %vm1020 = vcmp.ne.f32.partialorder %v344, %v344
        %v1021 = vsel %vm1020, 127, %v1019
        %v1022 = vshrl.u32 %v1006, 24
        %v1023 = vor.u32 %v1021, %v1022
        %v1024 = vor.u32 %v1023, 4294967040
        %v1026 = vand.u32 2147483647, %v346
        %v1027 = vand.u32 %v346, 2147483648
        %v1029 = vadd.f32 1182793728, %v1026
        %v1031 = vsub.s32 %v1029, 1182793728
        %v1032 = vshrl.u32 %v346, 20
        %v1033 = vand.u32 %v1032, 1
        %v1034 = vadd.s32 %v1026, 3288858623
        %v1035 = vadd.s32 %v1034, %v1033
        %v1036 = vshrl.u32 %v1035, 20
        %vm1037 = vcmp.lt.s32.totalorder %v1026, 1015021568
        %v1038 = vsel %vm1037, %v1031, %v1036
        %vm1039 = vcmp.ge.s32.totalorder %v1026, 1139277825
        %v1040 = vsel %vm1039, 127, %v1038
        %vm1041 = vcmp.ne.f32.partialorder %v346, %v346
        %v1042 = vsel %vm1041, 127, %v1040
        %v1043 = vshrl.u32 %v1027, 24
        %v1044 = vor.u32 %v1042, %v1043
        %v1045 = vor.u32 %v1044, 4294967040
        %v1047 = vpack.c.b16 %v1003, %v982
        %v1048 = vpack.c.b16 %v1045, %v1024
        %v1049 = vpack.c.b8 %v1048, %v1047
        %1051 = vst [vmem:[%s188] sm:$0xff] %v433
        %1052 = vst [vmem:[%s188 + $0x8] sm:$0xff] %v521
        %1053 = vst [vmem:[%s188 + $0x10] sm:$0xff] %v609
        %1054 = vst [vmem:[%s188 + $0x18] sm:$0xff] %v697
        %1055 = vst [vmem:[%s188 + $0x20] sm:$0xff] %v785
        %1056 = vst [vmem:[%s188 + $0x28] sm:$0xff] %v873
        %1057 = vst [vmem:[%s188 + $0x30] sm:$0xff] %v961
        %1058 = vst [vmem:[%s188 + $0x38] sm:$0xff] %v1049
        %s1059 = sand.u32 %s91, 1
        %s1060 = scalar_lea.sflag [#allocation5], %s1059
        %s1061 = sand.u32 %s91, 1
        %s1062 = smul.addr %s1061, 64
        %s1063 = scalar_lea.vmem [#allocation6], %s1062
        // Predicated region
        $region33: #{tpu_custom_call.1} parent=27 // pred_check
          %p1064 = pneg %p101
        $region34: #{tpu_custom_call.1} parent=27 // pred_check_branch
          %1066 = sbr.rel (%p1064) target = $region36
        $region35: #{tpu_custom_call.1} parent=27 // pred_region
          %s1067 = smul.u32 4, %s24
          %s1068 = smul.u32 2, %s25
          %s1070 = ssub.s32 1024, 1024
          %1071 = vsyncadd %s1060, %s1070
          %s1072 = smul.addr %s1067, 2
          %s1073 = sadd.s32 %s1068, %s1072
          %s1074 = smul.addr %s1073, 128
          %s1075 = scalar_lea.hbm %s2, %s1074
          %s1076 = sshll.u32 %s1063, 4
          %s1077 = int_to_ptr.vmem [resolvable:$true] %s1076
          %1082 = dma.vmem_to_hbm [thread:$0]  %s1077, 1024, %s1075, %s1060, 256, 256, 16
        $region36: #{tpu_custom_call.1} parent=27 // pred_fallthru
          _
      $region28: #{tpu_custom_call.1} parent=5 // pred_fallthru
        _
      %p1083 = scmp.le.s32.totalorder 2, %s15
      // Predicated region
      $region37: #{tpu_custom_call.1} parent=5 // pred_check
        %p1084 = pneg %p1083
      $region38: #{tpu_custom_call.1} parent=5 // pred_check_branch
        %1086 = sbr.rel (%p1084) target = $region40
      $region39: #{tpu_custom_call.1} parent=5 // pred_region
        %s1087 = ssub.s32 %s15, 2
        // Predicated region
        $region41: #{tpu_custom_call.1} parent=39 // pred_check
          %p1088 = pneg %p107
        $region42: #{tpu_custom_call.1} parent=39 // pred_check_branch
          %1090 = sbr.rel (%p1088) target = $region44
        $region43: #{tpu_custom_call.1} parent=39 // pred_region
          %s1091 = sand.u32 %s92, 1
          %s1092 = scalar_lea.sflag [#allocation5], %s1091
          %s1093 = sand.u32 %s92, 1
          %s1094 = smul.addr %s1093, 64
          %s1095 = scalar_lea.vmem [#allocation6], %s1094
          %1096 = dma.done %s1092, 1024
        $region44: #{tpu_custom_call.1} parent=39 // pred_fallthru
          _
      $region40: #{tpu_custom_call.1} parent=5 // pred_fallthru
        _
    $region6: #{tpu_custom_call.1} parent=1 // loop_footer
      %s19 = sadd.s32 1, %s15
    $region7: #{tpu_custom_call.1} parent=1 // loop_footer_branch
      %14 = sbr.rel target = $region3
    $region8: #{tpu_custom_call.1} parent=1 // loop_exit
      _
    %1097 = vsyncpa [#allocation4], 1
    %s1098 = scalar_lea.sflag [#allocation4], 1
    %1099 = vsyncpa %s1098, 1
    %1100 = vsyncpa [#allocation5], 1
    %s1101 = scalar_lea.sflag [#allocation5], 1
    %1102 = vsyncpa %s1101, 1

</llo_original>
